<compile_context>
chip_gen: v7x
topology: tpu7x:2x2x1
jax: 0.10.0
libtpu: 0.0.40
codegen_flags: <defaults>
</compile_context>

<pallas_src>
import jax
import jax.numpy as jnp
from jax.experimental import pallas as pl
from jax.experimental.pallas import tpu as pltpu


def _gate_kernel(u_ref, w1t_ref, w2t_ref, gate_ref, acc_ref):
    """Pooled-sum reduce over HW tiles + batched squeeze/excite + sigmoid."""
    t = pl.program_id(0)

    @pl.when(t == 0)
    def _():
        acc_ref[...] = jnp.zeros_like(acc_ref)

    T = u_ref.shape[-1]
    if T % 128 == 0:
        # VPU accumulation: elementwise-add 128-lane strips; defer the single
        # cross-lane (XLU) reduce to the final grid step.
        part = acc_ref[...]
        for i in range(T // 128):
            part = part + u_ref[:, :, i * 128:(i + 1) * 128].astype(jnp.float32)
        acc_ref[...] = part
    else:
        # HW not lane-aligned -> single full-extent tile; reduce into lane 0.
        acc_ref[:, :, 0:1] = acc_ref[:, :, 0:1] + jnp.sum(
            u_ref[...].astype(jnp.float32), axis=-1, keepdims=True)

    @pl.when(t == pl.num_programs(0) - 1)
    def _():
        # 1/HW is folded into w1t on the host, so the pooled *sum* suffices.
        z = jnp.sum(acc_ref[...], axis=-1)                              # (N, C)
        s = jnp.dot(z, w1t_ref[...], preferred_element_type=jnp.float32)  # (N, C/2)
        e = jnp.dot(s, w2t_ref[...], preferred_element_type=jnp.float32)  # (N, C)
        gate_ref[...] = jax.nn.sigmoid(e).astype(gate_ref.dtype)


def _scale_kernel(u_ref, g_ref, o_ref):
    """o = u * gate; gate (C, 1) broadcasts along the lane (HW) axis."""
    u = u_ref[...]                                # (C, T)
    g = g_ref[...].astype(u.dtype)                # (C, 1)
    o_ref[...] = (u * g).astype(o_ref.dtype)


def _choose_hw_tile(HW, bytes_per_hw_col, target_bytes=4 * 1024 * 1024):
    if HW % 128 != 0:
        # TODO(synk): non-lane-aligned HW falls back to one full-extent block
        # (masked partial stores); pad HW to a multiple of 128 upstream for
        # best store bandwidth.
        return HW
    t = HW
    while t * bytes_per_hw_col > target_bytes and t % 256 == 0:
        t //= 2
    return t


def _vmem_limit(need_bytes):
    return int(min(max(2 * need_bytes, 32 * 1024 * 1024), 48 * 1024 * 1024))


def cse_forward(U, w_squeeze, w_excite):
    """U: (N, C, H, W). w_squeeze: (C//2, C). w_excite: (C, C//2)."""
    N, C, H, W = U.shape
    HW = H * W
    C_sq = w_squeeze.shape[0]
    dsize = U.dtype.itemsize

    u_flat = U.reshape(N, C, HW)

    # Pre-transpose the 1x1-conv weights once and fold 1/HW (average pool)
    # into the squeeze weight -> layout-ready MXU operands, no in-kernel .T.
    w1t = w_squeeze.astype(jnp.float32).T * (1.0 / HW)     # (C, C_sq)
    w2t = w_excite.astype(jnp.float32).T                   # (C_sq, C)

    T = _choose_hw_tile(HW, N * C * dsize)
    n_hw = HW // T

    # ---------------- Pass 1: per-sample channel gates (N, C) ----------------
    gate_need = 2 * (N * C * T * dsize) + N * C * 128 * 4 + 2 * C * C_sq * 4 + N * C * 4
    gate = pl.pallas_call(
        _gate_kernel,
        out_shape=jax.ShapeDtypeStruct((N, C), jnp.float32),
        grid_spec=pltpu.PrefetchScalarGridSpec(
            num_scalar_prefetch=0,
            grid=(n_hw,),
            in_specs=[
                pl.BlockSpec((N, C, T), lambda t: (0, 0, t)),
                pl.BlockSpec((C, C_sq), lambda t: (0, 0)),
                pl.BlockSpec((C_sq, C), lambda t: (0, 0)),
            ],
            out_specs=pl.BlockSpec((N, C), lambda t: (0, 0)),
            scratch_shapes=[pltpu.VMEM((N, C, 128), jnp.float32)],
        ),
        compiler_params=pltpu.CompilerParams(
            dimension_semantics=("arbitrary",),
            vmem_limit_bytes=_vmem_limit(gate_need),
        ),
        cost_estimate=pl.CostEstimate(
            flops=int(N * C * HW + 4 * N * C * C_sq),
            transcendentals=int(N * C),
            bytes_accessed=int(N * C * HW * dsize + 2 * C * C_sq * 4 + N * C * 4),
        ),
    )(u_flat, w1t, w2t)

    # Free metadata reshape so the gate presents as (C, 1) tiles (C on
    # sublanes) -> pure lane-broadcast inside the scale kernel.
    gate3 = gate.reshape(N, C, 1)

    # ---------------- Pass 2: lane-dense elementwise scale ----------------
    scale_need = 4 * (C * T * dsize) + 2 * C * 4
    out = pl.pallas_call(
        _scale_kernel,
        out_shape=jax.ShapeDtypeStruct((N, C, HW), U.dtype),
        grid=(N, n_hw),
        in_specs=[
            pl.BlockSpec((pl.Squeezed(), C, T), lambda n, t: (n, 0, t)),
            pl.BlockSpec((pl.Squeezed(), C, 1), lambda n, t: (n, 0, 0)),
        ],
        out_specs=pl.BlockSpec((pl.Squeezed(), C, T), lambda n, t: (n, 0, t)),
        compiler_params=pltpu.CompilerParams(
            dimension_semantics=("parallel", "parallel"),
            vmem_limit_bytes=_vmem_limit(scale_need),
        ),
        cost_estimate=pl.CostEstimate(
            flops=int(N * C * HW),
            transcendentals=0,
            bytes_accessed=int(2 * N * C * HW * dsize + N * C * 4),
        ),
    )(u_flat, gate3)

    return out.reshape(N, C, H, W)


def cse_reference(U, w_squeeze, w_excite):
    # Pure-JAX reference of the PyTorch forward, for a correctness check.
    z = jnp.mean(U, axis=(2, 3))                 # (N, C)
    s = z @ w_squeeze.T                          # (N, C//2)
    e = s @ w_excite.T                           # (N, C)
    g = jax.nn.sigmoid(e)[:, :, None, None]      # (N, C, 1, 1)
    return U * g


if __name__ == "__main__":
    key = jax.random.PRNGKey(0)
    k_u, k_w1, k_w2 = jax.random.split(key, 3)

    N, C, H, W = 2, 4, 16, 16  # in_channels=4 -> squeeze channels = 2

    U = jax.random.normal(k_u, (N, C, H, W), dtype=jnp.float32)
    # Deterministic synthetic weights (Conv2d 1x1 kernels squeezed to 2-D).
    w_squeeze = jax.random.normal(k_w1, (C // 2, C), dtype=jnp.float32) * 0.1
    w_excite = jax.random.normal(k_w2, (C, C // 2), dtype=jnp.float32) * 0.1

    out = cse_forward(U, w_squeeze, w_excite)
    out = jax.block_until_ready(out)

    ref = cse_reference(U, w_squeeze, w_excite)
    assert out.shape == (N, C, H, W)
    assert jnp.allclose(out, ref, atol=1e-5, rtol=1e-5), "mismatch vs reference"

    print("KERNEL_OK")
</pallas_src>

<mosaic_0001>
module attributes {stable_mosaic.version = 11 : i64} {
  func.func @_gate_kernel(%arg0: i32, %arg1: memref<2x4x256xf32, #tpu.memory_space<vmem>>, %arg2: memref<4x2xf32, #tpu.memory_space<vmem>>, %arg3: memref<2x4xf32, #tpu.memory_space<vmem>>, %arg4: memref<2x4xf32, #tpu.memory_space<vmem>>, %arg5: memref<2x4x128xf32, #tpu.memory_space<vmem>>) attributes {dimension_semantics = [#tpu.dimension_semantics<arbitrary>], iteration_bounds = array<i64: 1>, scalar_prefetch = 0 : i64, scratch_operands = 1 : i64, tpu.core_type = #tpu.core_type<tc>, window_params = [{transform_indices = @transform_0, window_bounds = array<i64: 2, 4, 256>}, {pipeline_mode = #tpu.pipeline_mode<synchronous>, transform_indices = @transform_1, window_bounds = array<i64: 4, 2>}, {pipeline_mode = #tpu.pipeline_mode<synchronous>, transform_indices = @transform_2, window_bounds = array<i64: 2, 4>}, {pipeline_mode = #tpu.pipeline_mode<synchronous>, transform_indices = @transform_3, window_bounds = array<i64: 2, 4>}]} {
    %c0_i32 = arith.constant 0 : i32
    %0 = arith.cmpi eq, %arg0, %c0_i32 : i32
    %1 = arith.extui %0 : i1 to i32
    %c0_i32_0 = arith.constant 0 : i32
    %2 = arith.cmpi ne, %1, %c0_i32_0 : i32
    scf.if %2 {
      %cst = arith.constant 0.000000e+00 : f32
      %12 = vector.broadcast %cst : f32 to vector<2x4x128xf32>
      %c0_13 = arith.constant 0 : index
      %c0_14 = arith.constant 0 : index
      %c0_15 = arith.constant 0 : index
      %13 = vector.load %arg5[%c0_13, %c0_14, %c0_15] : memref<2x4x128xf32, #tpu.memory_space<vmem>>, vector<2x4x128xf32>
      tpu.vector_store %arg5[%c0_13, %c0_14, %c0_15], %12 {strides = array<i32>} : memref<2x4x128xf32, #tpu.memory_space<vmem>>, vector<2x4x128xf32>,
    } else {
    }
    %c0 = arith.constant 0 : index
    %c0_1 = arith.constant 0 : index
    %c0_2 = arith.constant 0 : index
    %3 = vector.load %arg5[%c0, %c0_1, %c0_2] : memref<2x4x128xf32, #tpu.memory_space<vmem>>, vector<2x4x128xf32>
    %c0_3 = arith.constant 0 : index
    %c0_4 = arith.constant 0 : index
    %c0_5 = arith.constant 0 : index
    %4 = vector.load %arg1[%c0_3, %c0_4, %c0_5] : memref<2x4x256xf32, #tpu.memory_space<vmem>>, vector<2x4x128xf32>
    %5 = arith.addf %3, %4 : vector<2x4x128xf32>
    %c0_6 = arith.constant 0 : index
    %c0_7 = arith.constant 0 : index
    %c128 = arith.constant 128 : index
    %6 = vector.load %arg1[%c0_6, %c0_7, %c128] : memref<2x4x256xf32, #tpu.memory_space<vmem>>, vector<2x4x128xf32>
    %7 = arith.addf %5, %6 : vector<2x4x128xf32>
    %c0_8 = arith.constant 0 : index
    %c0_9 = arith.constant 0 : index
    %c0_10 = arith.constant 0 : index
    %8 = vector.load %arg5[%c0_8, %c0_9, %c0_10] : memref<2x4x128xf32, #tpu.memory_space<vmem>>, vector<2x4x128xf32>
    tpu.vector_store %arg5[%c0_8, %c0_9, %c0_10], %7 {strides = array<i32>} : memref<2x4x128xf32, #tpu.memory_space<vmem>>, vector<2x4x128xf32>,
    %c0_i32_11 = arith.constant 0 : i32
    %9 = arith.cmpi eq, %arg0, %c0_i32_11 : i32
    %10 = arith.extui %9 : i1 to i32
    %c0_i32_12 = arith.constant 0 : i32
    %11 = arith.cmpi ne, %10, %c0_i32_12 : i32
    scf.if %11 {
      %c0_13 = arith.constant 0 : index
      %c0_14 = arith.constant 0 : index
      %c0_15 = arith.constant 0 : index
      %12 = vector.load %arg5[%c0_13, %c0_14, %c0_15] : memref<2x4x128xf32, #tpu.memory_space<vmem>>, vector<2x4x128xf32>
      %cst = arith.constant dense<0.000000e+00> : vector<2x4xf32>
      %13 = vector.multi_reduction <add>, %12, %cst [2] : vector<2x4x128xf32> to vector<2x4xf32>
      %c0_16 = arith.constant 0 : index
      %c0_17 = arith.constant 0 : index
      %14 = vector.load %arg2[%c0_16, %c0_17] : memref<4x2xf32, #tpu.memory_space<vmem>>, vector<4x2xf32>
      %cst_18 = arith.constant dense<0.000000e+00> : vector<2x2xf32>
      %15 = tpu.matmul %13, %14, %cst_18 {dimension_numbers = #tpu.dot_dimension_numbers<[1], [0], [0], [1], [0, 0, 1, 1], [], []>} : vector<2x4xf32>, vector<4x2xf32>, vector<2x2xf32> -> vector<2x2xf32>
      %c0_19 = arith.constant 0 : index
      %c0_20 = arith.constant 0 : index
      %16 = vector.load %arg3[%c0_19, %c0_20] : memref<2x4xf32, #tpu.memory_space<vmem>>, vector<2x4xf32>
      %cst_21 = arith.constant dense<0.000000e+00> : vector<2x4xf32>
      %17 = tpu.matmul %15, %16, %cst_21 {dimension_numbers = #tpu.dot_dimension_numbers<[1], [0], [0], [1], [0, 0, 1, 1], [], []>} : vector<2x2xf32>, vector<2x4xf32>, vector<2x4xf32> -> vector<2x4xf32>
      %18 = arith.negf %17 : vector<2x4xf32>
      %19 = math.exp %18 : vector<2x4xf32>
      %cst_22 = arith.constant 1.000000e+00 : f32
      %20 = vector.broadcast %cst_22 : f32 to vector<2x4xf32>
      %21 = arith.addf %20, %19 : vector<2x4xf32>
      %22 = arith.divf %20, %21 : vector<2x4xf32>
      %c0_23 = arith.constant 0 : index
      %c0_24 = arith.constant 0 : index
      %23 = vector.load %arg4[%c0_23, %c0_24] : memref<2x4xf32, #tpu.memory_space<vmem>>, vector<2x4xf32>
      tpu.vector_store %arg4[%c0_23, %c0_24], %22 {strides = array<i32>} : memref<2x4xf32, #tpu.memory_space<vmem>>, vector<2x4xf32>,
    } else {
    }
    return
  }
  func.func @transform_0(%arg0: i32) -> (i32, i32, i32) {
    %c0_i32 = arith.constant 0 : i32
    %c0_i32_0 = arith.constant 0 : i32
    %c0_i32_1 = arith.constant 0 : i32
    return %c0_i32, %c0_i32_0, %arg0 : i32, i32, i32
  }
  func.func @transform_1(%arg0: i32) -> (i32, i32) {
    %c0_i32 = arith.constant 0 : i32
    %c0_i32_0 = arith.constant 0 : i32
    %c0_i32_1 = arith.constant 0 : i32
    return %c0_i32, %c0_i32_0 : i32, i32
  }
  func.func @transform_2(%arg0: i32) -> (i32, i32) {
    %c0_i32 = arith.constant 0 : i32
    %c0_i32_0 = arith.constant 0 : i32
    %c0_i32_1 = arith.constant 0 : i32
    return %c0_i32, %c0_i32_0 : i32, i32
  }
  func.func @transform_3(%arg0: i32) -> (i32, i32) {
    %c0_i32 = arith.constant 0 : i32
    %c0_i32_0 = arith.constant 0 : i32
    %c0_i32_1 = arith.constant 0 : i32
    return %c0_i32, %c0_i32_0 : i32, i32
  }
}

</mosaic_0001>

<llo_original>
// kernel: tpu_custom_call.1
$region0: #{tpu_custom_call.1}
  #allocation0 [shape = 'u32[]', space=smem, size = 0x4, offset = 0x4, fixed_abs, tag = 'smem constant byte address 0x4 - core index']
  #allocation1 [shape = 'u32[144,128]{1,0:T(1,128)}', space=vmem, size = 0x12000, scoped, tag = 'internal scratch']
  #allocation2 [shape = 'f32[2,4,128]{2,1,0:T(4,128)}', space=vmem, size = 0x1000, scoped, tag = 'scratch operand']
  %s0 = inlined_call_operand.hbm [shape: f32[2,4,256], index: 0, kind: input, shape index: {}]
  %s1 = inlined_call_operand.vmem [shape: f32[4,2], index: 1, kind: input, shape index: {}]
  %s2 = inlined_call_operand.vmem [shape: f32[2,4], index: 2, kind: input, shape index: {}]
  %s3 = inlined_call_operand.hbm [shape: f32[2,4], index: 3, kind: output, shape index: {}]
  %s4 = sld [smem:[#allocation0]]
  $region34: #{tpu_custom_call.1} parent=0
    _
  %s6 = ssub.s32 1, %s4
  %s7 = scalar_select 0, %s6, %s4
  $region1: #{tpu_custom_call.1} parent=0
    #allocation3 [shape = 'u8[8192]{0}', space=vmem, size = 0x2000, scoped, tag = 'input window, operand 0, single buffered']
    #allocation4 [shape = 's32[1]{0}', space=sflag, size = 0x4, scoped, tag = 'scoped memory for tpu_custom_call.1']
    #allocation5 [shape = 's32[1]{0}', space=sflag, size = 0x4, scoped, tag = 'scoped memory for tpu_custom_call.1']
    #allocation6 [shape = 'u8[1024]{0}', space=vmem, size = 0x400, scoped, tag = 'output window, operand 0, single buffered']
    %8 = vsyncpa [#allocation4], 0
    %9 = vsyncpa [#allocation5], 0
    // Predicated region
    $region2: #{tpu_custom_call.1} parent=1 // pred_check
      _
    $region3: #{tpu_custom_call.1} parent=1 // pred_check_branch
      %11 = sbr.rel (0) target = $region5
    $region4: #{tpu_custom_call.1} parent=1 // pred_region
      %s13 = ssub.s32 256, 256
      %14 = vsyncadd [#allocation4], %s13
      %s15 = sshll.u32 [#allocation3], 4
      %s16 = int_to_ptr.vmem [resolvable:$true] %s15
      %21 = dma.hbm_to_vmem [thread:$0]  %s0, 256, %s16, [#allocation4], 128, 128, 8
    $region5: #{tpu_custom_call.1} parent=1 // pred_fallthru
      _
    // Predicated region
    $region6: #{tpu_custom_call.1} parent=1 // pred_check
      _
    $region7: #{tpu_custom_call.1} parent=1 // pred_check_branch
      %23 = sbr.rel (0) target = $region9
    $region8: #{tpu_custom_call.1} parent=1 // pred_region
      _
    $region9: #{tpu_custom_call.1} parent=1 // pred_fallthru
      _
    // Predicated region
    $region10: #{tpu_custom_call.1} parent=1 // pred_check
      _
    $region11: #{tpu_custom_call.1} parent=1 // pred_check_branch
      %25 = sbr.rel (0) target = $region13
    $region12: #{tpu_custom_call.1} parent=1 // pred_region
      _
    $region13: #{tpu_custom_call.1} parent=1 // pred_fallthru
      _
    // Predicated region
    $region14: #{tpu_custom_call.1} parent=1 // pred_check
      _
    $region15: #{tpu_custom_call.1} parent=1 // pred_check_branch
      %27 = sbr.rel (0) target = $region17
    $region16: #{tpu_custom_call.1} parent=1 // pred_region
      %28 = dma.done [#allocation4], 256
    $region17: #{tpu_custom_call.1} parent=1 // pred_fallthru
      _
    %p29 = scmp.eq.s32.totalorder 0, 0
    // Predicated region
    $region18: #{tpu_custom_call.1} parent=1 // pred_check
      %p30 = pneg %p29
    $region19: #{tpu_custom_call.1} parent=1 // pred_check_branch
      %32 = sbr.rel (%p30) target = $region21
    $region20: #{tpu_custom_call.1} parent=1 // pred_region
      %33 = vst [vmem:[#allocation2] sm:$0xf] 0.0
      %34 = vst [vmem:[#allocation2 + $0x4] sm:$0xf] 0.0
    $region21: #{tpu_custom_call.1} parent=1 // pred_fallthru
      _
    %v35 = vld [vmem:[#allocation2] sm:$0xf]
    %v36 = vld [vmem:[#allocation2 + $0x4] sm:$0xf]
    %v37 = vld [vmem:[#allocation3] sm:$0xf]
    %v38 = vld [vmem:[#allocation3 + $0x8] sm:$0xf]
    %v39 = vadd.f32 %v35, %v37
    %v40 = vadd.f32 %v36, %v38
    %v41 = vld [vmem:[#allocation3 + $0x4] sm:$0xf]
    %v42 = vld [vmem:[#allocation3 + $0xc] sm:$0xf]
    %v43 = vadd.f32 %v39, %v41
    %v44 = vadd.f32 %v40, %v42
    %45 = vst [vmem:[#allocation2] sm:$0xf] %v43
    %46 = vst [vmem:[#allocation2 + $0x4] sm:$0xf] %v44
    // Predicated region
    $region22: #{tpu_custom_call.1} parent=1 // pred_check
      %p47 = pneg %p29
    $region23: #{tpu_custom_call.1} parent=1 // pred_check_branch
      %49 = sbr.rel (%p47) target = $region25
    $region24: #{tpu_custom_call.1} parent=1 // pred_region
      %v50 = vld [vmem:[#allocation2] sm:$0xf]
      %v51 = vld [vmem:[#allocation2 + $0x4] sm:$0xf]
      %vm52 = vcmask 1043456
      %v53 = vsel %vm52, %v50, 0.0
      %54 = vadd.xlane.f32.xlu0 %v53
      %v55 = vpop.xlane.xlu0 %54
      %v56 = vsel %vm52, %v51, 0.0
      %57 = vadd.xlane.f32.xlu0 %v56
      %v58 = vpop.xlane.xlu0 %57
      %v59 = vld [vmem:[%s1] sm:$0xf]
      %v62 = vlaneseq
      %v63 = vand.u32 %v62, 127
      %v64 = vlaneseq
      %v65 = vshrl.u32 %v64, 7
      %v66 = vsub.s32 %v63, %v65
      %v67 = vrot.slane %v55, %v66
      %v68 = vlaneseq
      %v69 = vshrl.u32 %v68, 7
      %v70 = vsub.s32 %v63, %v69
      %v71 = vrot.slane %v58, %v70
      %vm72 = vcmask 1041409
      %v73 = vsel %vm72, %v71, %v67
      %vm74 = vcmask 31744
      %v75 = vsel %vm74, %v73, 0
      %v78 = vsel %vm52, %v59, 0
      %80 = vmatprep.subr.mxu0 0.0
      %81 = vmatpush1.msra.mxu0 %v78
      %82 = vmatprep.subr.mxu0 0.0
      %83 = vmatpush1.msra.mxu0 0.0
      %84 = vmatprep.subr.mxu0 0.0
      %85 = vmatpush1.msra.mxu0 0.0
      %86 = vmatprep.subr.mxu0 0.0
      %87 = vmatpush1.msra.mxu0 0.0
      %88 = vmatprep.subr.mxu0 0.0
      %89 = vmatpush1.msra.mxu0 0.0
      %90 = vmatprep.subr.mxu0 0.0
      %91 = vmatpush1.msra.mxu0 0.0
      %92 = vmatprep.subr.mxu0 0.0
      %93 = vmatpush1.msra.mxu0 0.0
      %94 = vmatprep.subr.mxu0 0.0
      %95 = vmatpush1.msra.mxu0 0.0
      %96 = vmatprep.subr.mxu0 0.0
      %97 = vmatpush1.msra.mxu0 0.0
      %98 = vmatprep.subr.mxu0 0.0
      %99 = vmatpush1.msra.mxu0 0.0
      %100 = vmatprep.subr.mxu0 0.0
      %101 = vmatpush1.msra.mxu0 0.0
      %102 = vmatprep.subr.mxu0 0.0
      %103 = vmatpush1.msra.mxu0 0.0
      %104 = vmatprep.subr.mxu0 0.0
      %105 = vmatpush1.msra.mxu0 0.0
      %106 = vmatprep.subr.mxu0 0.0
      %107 = vmatpush1.msra.mxu0 0.0
      %108 = vmatprep.subr.mxu0 0.0
      %109 = vmatpush1.msra.mxu0 0.0
      %110 = vmatprep.subr.mxu0 0.0
      %111 = vmatpush1.msra.mxu0 0.0
      %112 = vmatprep.subr.mxu0 0.0
      %113 = vmatpush1.msra.mxu0 0.0
      %114 = vmatprep.subr.mxu0 0.0
      %115 = vmatpush1.msra.mxu0 0.0
      %116 = vmatprep.subr.mxu0 0.0
      %117 = vmatpush1.msra.mxu0 0.0
      %118 = vmatprep.subr.mxu0 0.0
      %119 = vmatpush1.msra.mxu0 0.0
      %120 = vmatprep.subr.mxu0 0.0
      %121 = vmatpush1.msra.mxu0 0.0
      %122 = vmatprep.subr.mxu0 0.0
      %123 = vmatpush1.msra.mxu0 0.0
      %124 = vmatprep.subr.mxu0 0.0
      %125 = vmatpush1.msra.mxu0 0.0
      %126 = vmatprep.subr.mxu0 0.0
      %127 = vmatpush1.msra.mxu0 0.0
      %128 = vmatprep.subr.mxu0 0.0
      %129 = vmatpush1.msra.mxu0 0.0
      %130 = vmatprep.subr.mxu0 0.0
      %131 = vmatpush1.msra.mxu0 0.0
      %132 = vmatprep.subr.mxu0 0.0
      %133 = vmatpush1.msra.mxu0 0.0
      %134 = vmatprep.subr.mxu0 0.0
      %135 = vmatpush1.msra.mxu0 0.0
      %136 = vmatprep.subr.mxu0 0.0
      %137 = vmatpush1.msra.mxu0 0.0
      %138 = vmatprep.subr.mxu0 0.0
      %139 = vmatpush1.msra.mxu0 0.0
      %140 = vmatprep.subr.mxu0 0.0
      %141 = vmatpush1.msra.mxu0 0.0
      %142 = vmatprep.subr.mxu0 0.0
      %143 = vmatpush1.msra.mxu0 0.0
      %144 = vmatprep.mubr.f32.mxu0 0.0
      %145 = vmatmul.mubr.f32.gmra.mrb[0].mxu0 %v75
      %v146 = vpop.f32.mrb[0].mxu0
      %v147 = vadd.f32 0.0, %v146
      %v148 = vpop.f32.mrb[0].mxu0
      %149 = vdwg.mxu0
      %v150 = vld [vmem:[%s2] sm:$0x3]
      %vm151 = vcmask 15360
      %v153 = vsel %vm151, %v147, 0
      %vm155 = vcmask 1041408
      %v157 = vsel %vm155, %v150, 0
      %159 = vmatprep.subr.mxu0 0.0
      %160 = vmatpush1.msra.mxu0 %v157
      %161 = vmatprep.subr.mxu0 0.0
      %162 = vmatpush1.msra.mxu0 0.0
      %163 = vmatprep.subr.mxu0 0.0
      %164 = vmatpush1.msra.mxu0 0.0
      %165 = vmatprep.subr.mxu0 0.0
      %166 = vmatpush1.msra.mxu0 0.0
      %167 = vmatprep.subr.mxu0 0.0
      %168 = vmatpush1.msra.mxu0 0.0
      %169 = vmatprep.subr.mxu0 0.0
      %170 = vmatpush1.msra.mxu0 0.0
      %171 = vmatprep.subr.mxu0 0.0
      %172 = vmatpush1.msra.mxu0 0.0
      %173 = vmatprep.subr.mxu0 0.0
      %174 = vmatpush1.msra.mxu0 0.0
      %175 = vmatprep.subr.mxu0 0.0
      %176 = vmatpush1.msra.mxu0 0.0
      %177 = vmatprep.subr.mxu0 0.0
      %178 = vmatpush1.msra.mxu0 0.0
      %179 = vmatprep.subr.mxu0 0.0
      %180 = vmatpush1.msra.mxu0 0.0
      %181 = vmatprep.subr.mxu0 0.0
      %182 = vmatpush1.msra.mxu0 0.0
      %183 = vmatprep.subr.mxu0 0.0
      %184 = vmatpush1.msra.mxu0 0.0
      %185 = vmatprep.subr.mxu0 0.0
      %186 = vmatpush1.msra.mxu0 0.0
      %187 = vmatprep.subr.mxu0 0.0
      %188 = vmatpush1.msra.mxu0 0.0
      %189 = vmatprep.subr.mxu0 0.0
      %190 = vmatpush1.msra.mxu0 0.0
      %191 = vmatprep.subr.mxu0 0.0
      %192 = vmatpush1.msra.mxu0 0.0
      %193 = vmatprep.subr.mxu0 0.0
      %194 = vmatpush1.msra.mxu0 0.0
      %195 = vmatprep.subr.mxu0 0.0
      %196 = vmatpush1.msra.mxu0 0.0
      %197 = vmatprep.subr.mxu0 0.0
      %198 = vmatpush1.msra.mxu0 0.0
      %199 = vmatprep.subr.mxu0 0.0
      %200 = vmatpush1.msra.mxu0 0.0
      %201 = vmatprep.subr.mxu0 0.0
      %202 = vmatpush1.msra.mxu0 0.0
      %203 = vmatprep.subr.mxu0 0.0
      %204 = vmatpush1.msra.mxu0 0.0
      %205 = vmatprep.subr.mxu0 0.0
      %206 = vmatpush1.msra.mxu0 0.0
      %207 = vmatprep.subr.mxu0 0.0
      %208 = vmatpush1.msra.mxu0 0.0
      %209 = vmatprep.subr.mxu0 0.0
      %210 = vmatpush1.msra.mxu0 0.0
      %211 = vmatprep.subr.mxu0 0.0
      %212 = vmatpush1.msra.mxu0 0.0
      %213 = vmatprep.subr.mxu0 0.0
      %214 = vmatpush1.msra.mxu0 0.0
      %215 = vmatprep.subr.mxu0 0.0
      %216 = vmatpush1.msra.mxu0 0.0
      %217 = vmatprep.subr.mxu0 0.0
      %218 = vmatpush1.msra.mxu0 0.0
      %219 = vmatprep.subr.mxu0 0.0
      %220 = vmatpush1.msra.mxu0 0.0
      %221 = vmatprep.subr.mxu0 0.0
      %222 = vmatpush1.msra.mxu0 0.0
      %223 = vmatprep.mubr.f32.mxu0 0.0
      %224 = vmatmul.mubr.f32.gmra.mrb[0].mxu0 %v153
      %v225 = vpop.f32.mrb[0].mxu0
      %v226 = vadd.f32 0.0, %v225
      %v227 = vpop.f32.mrb[0].mxu0
      %228 = vdwg.mxu0
      %v229 = vxor.u32 %v226, 2147483648
      %v230 = vmul.f32 %v229, 1.442695
      %v231 = vpow.pop %v230
      %v232 = vadd.f32 %v231, 1.0
      %v233 = vrcp.pop %v232
      %v234 = vmul.f32 1.0, %v233
      %vm235 = vcmask 25600
      %236 = vst.msk [vmem:[#allocation6] sm:$0x3] %vm235, %v234
    $region25: #{tpu_custom_call.1} parent=1 // pred_fallthru
      _
    // Predicated region
    $region26: #{tpu_custom_call.1} parent=1 // pred_check
      _
    $region27: #{tpu_custom_call.1} parent=1 // pred_check_branch
      %238 = sbr.rel (0) target = $region29
    $region28: #{tpu_custom_call.1} parent=1 // pred_region
      %s240 = ssub.s32 32, 32
      %241 = vsyncadd [#allocation5], %s240
      %s243 = sshll.u32 [#allocation6], 4
      %s244 = int_to_ptr.vmem [resolvable:$true] %s243
      %246 = dma.vmem_to_hbm [thread:$0]  %s244, 32, %s3, [#allocation5]
    $region29: #{tpu_custom_call.1} parent=1 // pred_fallthru
      _
    // Predicated region
    $region30: #{tpu_custom_call.1} parent=1 // pred_check
      _
    $region31: #{tpu_custom_call.1} parent=1 // pred_check_branch
      %248 = sbr.rel (0) target = $region33
    $region32: #{tpu_custom_call.1} parent=1 // pred_region
      %249 = dma.done [#allocation5], 32
    $region33: #{tpu_custom_call.1} parent=1 // pred_fallthru
      _
    %250 = vsyncpa [#allocation4], 1
    %251 = vsyncpa [#allocation5], 1

</llo_original>
